<compile_context>
chip_gen: v5e
topology: v5e:2x2
jax: 0.10.0
libtpu: 0.0.40
codegen_flags: <defaults>
</compile_context>

<pallas_src>
import jax
import jax.numpy as jnp
from jax.experimental import pallas as pl
from jax.experimental.pallas import tpu as pltpu


def _round_up(v, m):
    return ((v + m - 1) // m) * m


def _pick_tile(total, pref, align):
    """Largest multiple of `align` <= pref that divides `total` (total % align == 0)."""
    t = min(pref, total)
    t -= t % align
    t = max(t, align)
    while total % t:
        t -= align
    return t


# ----------------------------------------------------------------------------
# Kernel 1: fused  Conv(down, as matmul) -> ReLU -> ConvT(up, as matmul)
#   LeakyReLU is pre-applied to x in the wrapper (once, not per im2col copy).
#   grid = (M tiles, Npad tiles); h is computed once per M tile (j == 0) into a
#   VMEM scratch and reused for every Npad tile.
# ----------------------------------------------------------------------------
def _fused_down_up_kernel(a_ref, b1_ref, b2_ref, o_ref, h_ref):
    # a_ref : (tm, K1)      bf16   im2col patches of LeakyReLU(x)
    # b1_ref: (K1, innerP)  bf16   down-conv weight, inner dim zero-padded to innerP
    # b2_ref: (innerP, tn)  bf16   up-conv weight tile (lane-padded)
    # o_ref : (tm, tn)      bf16   per-position transposed-conv taps ("cols")
    # h_ref : (tm, innerP)  bf16   VMEM scratch, persists across the j axis
    @pl.when(pl.program_id(1) == 0)
    def _():
        h = jnp.dot(a_ref[...], b1_ref[...], preferred_element_type=jnp.float32)
        h_ref[...] = jnp.maximum(h, 0.0).astype(jnp.bfloat16)           # ReLU

    o_ref[...] = jnp.dot(h_ref[...], b2_ref[...],
                         preferred_element_type=jnp.float32).astype(o_ref.dtype)


# ----------------------------------------------------------------------------
# Kernel 2: BatchNorm affine + skip-concat writer (single pass over x and up).
# ----------------------------------------------------------------------------
def _bn_affine_concat_kernel(x_ref, up_ref, s_ref, b_ref, o_ref):
    # x: (1, Ci, thw)  up: (1, Co, thw)  s/b: (1, Co, 1)  o: (1, Ci+Co, thw)
    ci = x_ref.shape[1]
    o_ref[:, :ci, :] = x_ref[...]                                       # skip connection
    o_ref[:, ci:, :] = up_ref[...] * s_ref[...] + b_ref[...]            # BN affine


# ----------------------------------------------------------------------------
# Full forward pass of the innermost UnetSkipConnectionBlock
# ----------------------------------------------------------------------------
def unet_innermost_forward(x, w_down, w_up, gamma, beta, eps=1e-5,
                           tm=512, tn=256, thw=2048):
    N, Ci, H, W = x.shape
    assert H % 2 == 0 and W % 2 == 0
    inner_nc = w_down.shape[0]
    outer_nc = w_up.shape[1]
    Ho, Wo = H // 2, W // 2
    HW = H * W
    M = N * Ho * Wo
    K1 = Ci * 16
    innerP = _round_up(inner_nc, 128)        # lane-dense h (v6e/v7x could prefer 256)
    Ncols = outer_nc * 16
    Npad = _round_up(Ncols, 128)             # lane-dense cols output (unmasked vst)

    # ---- LeakyReLU applied once to x (NOT on the 4x-duplicated im2col matrix) ----
    xa = jnp.where(x > 0, x, 0.2 * x)

    # ---- im2col of LeakyReLU(x); column order = (ci, kh, kw) ----
    # TODO(synk): move the im2col into kernel 1 with halo-overlapping DMAs of padded x so
    # the 4x-expanded patch matrix never hits HBM.
    xph = jnp.pad(xa.transpose(0, 2, 3, 1), ((0, 0), (1, 1), (1, 1), (0, 0)))
    taps = [xph[:, kh:kh + 2 * Ho:2, kw:kw + 2 * Wo:2, :]
            for kh in range(4) for kw in range(4)]          # 16 x [N,Ho,Wo,Ci]
    a1 = jnp.stack(taps, axis=-1).reshape(M, K1).astype(jnp.bfloat16)

    tm_eff = min(tm, _round_up(M, 8))
    Mp = _round_up(M, tm_eff)
    if Mp != M:
        a1 = jnp.pad(a1, ((0, Mp - M), (0, 0)))
    tn_eff = _pick_tile(Npad, tn, 128)       # 128-wide output tiles already saturate v5e

    b1 = jnp.pad(w_down.reshape(inner_nc, K1).T,
                 ((0, 0), (0, innerP - inner_nc))).astype(jnp.bfloat16)   # [K1, innerP]
    b2 = jnp.pad(w_up.reshape(inner_nc, Ncols),
                 ((0, innerP - inner_nc), (0, Npad - Ncols))).astype(jnp.bfloat16)

    flops = 2 * Mp * (K1 * innerP + innerP * Npad)
    bytes_accessed = (Mp * K1 * 2 + K1 * innerP * 2 + innerP * Npad * 2 + Mp * Npad * 2)

    # NOTE: at production widths, b1/b2 could additionally be single-buffered
    # (grid-invariant weights) to halve their VMEM footprint; left at the default here.
    cols = pl.pallas_call(
        _fused_down_up_kernel,
        out_shape=jax.ShapeDtypeStruct((Mp, Npad), jnp.bfloat16),
        grid_spec=pltpu.PrefetchScalarGridSpec(
            num_scalar_prefetch=0,
            grid=(Mp // tm_eff, Npad // tn_eff),
            in_specs=[pl.BlockSpec((tm_eff, K1), lambda i, j: (i, 0)),
                      pl.BlockSpec((K1, innerP), lambda i, j: (0, 0)),
                      pl.BlockSpec((innerP, tn_eff), lambda i, j: (0, j))],
            out_specs=pl.BlockSpec((tm_eff, tn_eff), lambda i, j: (i, j)),
            scratch_shapes=[pltpu.VMEM((tm_eff, innerP), jnp.bfloat16)],
        ),
        compiler_params=pltpu.CompilerParams(
            dimension_semantics=("parallel", "arbitrary"),
            vmem_limit_bytes=64 * 1024 * 1024),
        cost_estimate=pl.CostEstimate(flops=flops, transcendentals=0,
                                      bytes_accessed=bytes_accessed),
    )(a1, b1, b2)

    # ---- col2im of the transposed conv: parity-class gather (4 shifted adds/class) ----
    # TODO(synk): fuse this gather (and the BN partial sums) into kernel 1 via pltpu.roll
    # on per-batch tiles so the HBM-facing tensor is `up` instead of the 16x `cols` slab.
    cols6 = cols[:M, :Ncols].astype(jnp.float32).reshape(N, Ho, Wo, outer_nc, 4, 4)

    def _shift(a, d, axis):
        # result[..., idx, ...] = a[..., idx + d, ...]   (zeros where out of range)
        if d == 0:
            return a
        sl = [slice(None)] * a.ndim
        pad_cfg = [(0, 0)] * a.ndim
        if d < 0:
            sl[axis] = slice(0, a.shape[axis] + d)
            pad_cfg[axis] = (-d, 0)
        else:
            sl[axis] = slice(d, None)
            pad_cfg[axis] = (0, d)
        return jnp.pad(a[tuple(sl)], pad_cfg)

    tap_set = {0: ((0, 1), (-1, 3)), 1: ((0, 2), (1, 0))}   # parity -> ((shift, k), ...)
    cls_rows = []
    for po in (0, 1):
        row = []
        for pw in (0, 1):
            acc = jnp.zeros((N, Ho, Wo, outer_nc), jnp.float32)
            for di, kh in tap_set[po]:
                for dj, kw in tap_set[pw]:
                    acc = acc + _shift(_shift(cols6[..., kh, kw], di, 1), dj, 2)
            row.append(acc)
        cls_rows.append(jnp.stack(row, axis=0))
    cls = jnp.stack(cls_rows, axis=0)                        # [po, pw, N, Ho, Wo, Co]
    up3 = cls.transpose(2, 5, 3, 0, 4, 1).reshape(N, outer_nc, HW)   # NCHW, HW flattened

    # ---- BatchNorm2d batch statistics: reduced by XLA inside the same pass that builds
    # up3 (no extra HBM read of up); centered variance, biased divisor (BN training). ----
    mean = jnp.mean(up3, axis=(0, 2))
    var = jnp.mean(jnp.square(up3 - mean[None, :, None]), axis=(0, 2))
    scale = gamma / jnp.sqrt(var + eps)
    shift = beta - mean * scale

    # ---- BN affine + skip concat: ONE Pallas writer pass, lane-dense H*W tiles ----
    thw_eff = _pick_tile(HW, thw, 128) if HW % 128 == 0 else HW
    out3 = pl.pallas_call(
        _bn_affine_concat_kernel,
        out_shape=jax.ShapeDtypeStruct((N, Ci + outer_nc, HW), jnp.float32),
        grid_spec=pltpu.PrefetchScalarGridSpec(
            num_scalar_prefetch=0,
            grid=(N, HW // thw_eff),
            in_specs=[pl.BlockSpec((1, Ci, thw_eff), lambda n, t: (n, 0, t)),
                      pl.BlockSpec((1, outer_nc, thw_eff), lambda n, t: (n, 0, t)),
                      pl.BlockSpec((1, outer_nc, 1), lambda n, t: (0, 0, 0)),
                      pl.BlockSpec((1, outer_nc, 1), lambda n, t: (0, 0, 0))],
            out_specs=pl.BlockSpec((1, Ci + outer_nc, thw_eff), lambda n, t: (n, 0, t)),
        ),
        compiler_params=pltpu.CompilerParams(
            dimension_semantics=("parallel", "parallel")),
    )(x.reshape(N, Ci, HW), up3,
      scale.reshape(1, outer_nc, 1), shift.reshape(1, outer_nc, 1))

    # reshape of the flattened spatial axis back to (H, W) is metadata-only
    return out3.reshape(N, Ci + outer_nc, H, W)


# ----------------------------------------------------------------------------
if __name__ == "__main__":
    key = jax.random.PRNGKey(0)
    N, outer_nc, inner_nc, H, W = 2, 4, 8, 16, 16
    input_nc = outer_nc  # input_nc=None -> outer_nc in the PyTorch module

    k_x, k_d, k_u, k_g, k_b = jax.random.split(key, 5)
    x = jax.random.normal(k_x, (N, input_nc, H, W), jnp.float32)
    w_down = 0.1 * jax.random.normal(k_d, (inner_nc, input_nc, 4, 4), jnp.float32)  # Conv2d [O,I,kh,kw]
    w_up = 0.1 * jax.random.normal(k_u, (inner_nc, outer_nc, 4, 4), jnp.float32)    # ConvT  [I,O,kh,kw]
    gamma = 1.0 + 0.1 * jax.random.normal(k_g, (outer_nc,), jnp.float32)            # non-trivial affine
    beta = 0.1 * jax.random.normal(k_b, (outer_nc,), jnp.float32)

    out = jax.jit(unet_innermost_forward)(x, w_down, w_up, gamma, beta)
    out = jax.block_until_ready(out)
    assert out.shape == (N, input_nc + outer_nc, H, W)

    # pure-XLA f32 reference for correctness
    lrelu = jnp.where(x > 0, x, 0.2 * x)
    h_ref = jax.lax.conv_general_dilated(
        lrelu, w_down, window_strides=(2, 2), padding=((1, 1), (1, 1)),
        dimension_numbers=("NCHW", "OIHW", "NCHW"))
    relu = jnp.maximum(h_ref, 0.0)
    up_ref = jax.lax.conv_general_dilated(
        relu, w_up[:, :, ::-1, ::-1], window_strides=(1, 1),
        padding=((2, 2), (2, 2)), lhs_dilation=(2, 2),
        dimension_numbers=("NCHW", "IOHW", "NCHW"))
    mean = up_ref.mean(axis=(0, 2, 3), keepdims=True)
    var = up_ref.var(axis=(0, 2, 3), keepdims=True)
    bn_ref = ((up_ref - mean) / jnp.sqrt(var + 1e-5)
              * gamma.reshape(1, -1, 1, 1) + beta.reshape(1, -1, 1, 1))
    ref = jnp.concatenate([x, bn_ref], axis=1)
    # matmul operands and the cols tensor are bf16 (f32 accumulate) -> loosened tolerance
    assert bool(jnp.allclose(out, ref, rtol=5e-2, atol=5e-2)), "mismatch vs XLA reference"

    print("KERNEL_OK")
</pallas_src>

<mosaic_0001>
module attributes {stable_mosaic.version = 11 : i64} {
  func.func @_fused_down_up_kernel(%arg0: i32, %arg1: i32, %arg2: memref<128x64xbf16, #tpu.memory_space<vmem>>, %arg3: memref<64x128xbf16, #tpu.memory_space<vmem>>, %arg4: memref<128x128xbf16, #tpu.memory_space<vmem>>, %arg5: memref<128x128xbf16, #tpu.memory_space<vmem>>, %arg6: memref<128x128xbf16, #tpu.memory_space<vmem>>) attributes {dimension_semantics = [#tpu.dimension_semantics<parallel>, #tpu.dimension_semantics<arbitrary>], iteration_bounds = array<i64: 1, 1>, scalar_prefetch = 0 : i64, scratch_operands = 1 : i64, tpu.core_type = #tpu.core_type<tc>, window_params = [{transform_indices = @transform_0, window_bounds = array<i64: 128, 64>}, {pipeline_mode = #tpu.pipeline_mode<synchronous>, transform_indices = @transform_1, window_bounds = array<i64: 64, 128>}, {transform_indices = @transform_2, window_bounds = array<i64: 128, 128>}, {transform_indices = @transform_3, window_bounds = array<i64: 128, 128>}]} {
    %c0_i32 = arith.constant 0 : i32
    %0 = arith.cmpi eq, %arg1, %c0_i32 : i32
    %1 = arith.extui %0 : i1 to i32
    %c0_i32_0 = arith.constant 0 : i32
    %2 = arith.cmpi ne, %1, %c0_i32_0 : i32
    scf.if %2 {
      %c0_6 = arith.constant 0 : index
      %c0_7 = arith.constant 0 : index
      %8 = vector.load %arg2[%c0_6, %c0_7] : memref<128x64xbf16, #tpu.memory_space<vmem>>, vector<128x64xbf16>
      %c0_8 = arith.constant 0 : index
      %c0_9 = arith.constant 0 : index
      %9 = vector.load %arg3[%c0_8, %c0_9] : memref<64x128xbf16, #tpu.memory_space<vmem>>, vector<64x128xbf16>
      %cst_10 = arith.constant dense<0.000000e+00> : vector<128x128xf32>
      %10 = tpu.matmul %8, %9, %cst_10 {dimension_numbers = #tpu.dot_dimension_numbers<[1], [0], [0], [1], [0, 0, 1, 1], [], []>} : vector<128x64xbf16>, vector<64x128xbf16>, vector<128x128xf32> -> vector<128x128xf32>
      %cst_11 = arith.constant 0.000000e+00 : f32
      %11 = vector.broadcast %cst_11 : f32 to vector<128x128xf32>
      %12 = arith.maximumf %10, %11 : vector<128x128xf32>
      %13 = arith.truncf %12 : vector<128x128xf32> to vector<128x128xbf16>
      %c0_12 = arith.constant 0 : index
      %c0_13 = arith.constant 0 : index
      %14 = vector.load %arg6[%c0_12, %c0_13] : memref<128x128xbf16, #tpu.memory_space<vmem>>, vector<128x128xbf16>
      tpu.vector_store %arg6[%c0_12, %c0_13], %13 {strides = array<i32>} : memref<128x128xbf16, #tpu.memory_space<vmem>>, vector<128x128xbf16>,
    } else {
    }
    %c0 = arith.constant 0 : index
    %c0_1 = arith.constant 0 : index
    %3 = vector.load %arg6[%c0, %c0_1] : memref<128x128xbf16, #tpu.memory_space<vmem>>, vector<128x128xbf16>
    %c0_2 = arith.constant 0 : index
    %c0_3 = arith.constant 0 : index
    %4 = vector.load %arg4[%c0_2, %c0_3] : memref<128x128xbf16, #tpu.memory_space<vmem>>, vector<128x128xbf16>
    %cst = arith.constant dense<0.000000e+00> : vector<128x128xf32>
    %5 = tpu.matmul %3, %4, %cst {dimension_numbers = #tpu.dot_dimension_numbers<[1], [0], [0], [1], [0, 0, 1, 1], [], []>} : vector<128x128xbf16>, vector<128x128xbf16>, vector<128x128xf32> -> vector<128x128xf32>
    %6 = arith.truncf %5 : vector<128x128xf32> to vector<128x128xbf16>
    %c0_4 = arith.constant 0 : index
    %c0_5 = arith.constant 0 : index
    %7 = vector.load %arg5[%c0_4, %c0_5] : memref<128x128xbf16, #tpu.memory_space<vmem>>, vector<128x128xbf16>
    tpu.vector_store %arg5[%c0_4, %c0_5], %6 {strides = array<i32>} : memref<128x128xbf16, #tpu.memory_space<vmem>>, vector<128x128xbf16>,
    return
  }
  func.func @transform_0(%arg0: i32, %arg1: i32) -> (i32, i32) {
    %c0_i32 = arith.constant 0 : i32
    %c0_i32_0 = arith.constant 0 : i32
    return %arg0, %c0_i32 : i32, i32
  }
  func.func @transform_1(%arg0: i32, %arg1: i32) -> (i32, i32) {
    %c0_i32 = arith.constant 0 : i32
    %c0_i32_0 = arith.constant 0 : i32
    %c0_i32_1 = arith.constant 0 : i32
    return %c0_i32, %c0_i32_0 : i32, i32
  }
  func.func @transform_2(%arg0: i32, %arg1: i32) -> (i32, i32) {
    %c0_i32 = arith.constant 0 : i32
    %c0_i32_0 = arith.constant 0 : i32
    return %c0_i32, %arg1 : i32, i32
  }
  func.func @transform_3(%arg0: i32, %arg1: i32) -> (i32, i32) {
    %c0_i32 = arith.constant 0 : i32
    return %arg0, %arg1 : i32, i32
  }
}

module attributes {stable_mosaic.version = 11 : i64} {
  func.func @_bn_affine_concat_kernel(%arg0: i32, %arg1: i32, %arg2: memref<1x4x256xf32, #tpu.memory_space<vmem>>, %arg3: memref<1x4x256xf32, #tpu.memory_space<vmem>>, %arg4: memref<1x4x1xf32, #tpu.memory_space<vmem>>, %arg5: memref<1x4x1xf32, #tpu.memory_space<vmem>>, %arg6: memref<1x8x256xf32, #tpu.memory_space<vmem>>) attributes {dimension_semantics = [#tpu.dimension_semantics<parallel>, #tpu.dimension_semantics<parallel>], iteration_bounds = array<i64: 2, 1>, scalar_prefetch = 0 : i64, scratch_operands = 0 : i64, tpu.core_type = #tpu.core_type<tc>, window_params = [{transform_indices = @transform_0, window_bounds = array<i64: 1, 4, 256>}, {transform_indices = @transform_1, window_bounds = array<i64: 1, 4, 256>}, {pipeline_mode = #tpu.pipeline_mode<synchronous>, transform_indices = @transform_2, window_bounds = array<i64: 1, 4, 1>}, {pipeline_mode = #tpu.pipeline_mode<synchronous>, transform_indices = @transform_3, window_bounds = array<i64: 1, 4, 1>}, {transform_indices = @transform_4, window_bounds = array<i64: 1, 8, 256>}]} {
    %c0 = arith.constant 0 : index
    %c0_0 = arith.constant 0 : index
    %c0_1 = arith.constant 0 : index
    %0 = vector.load %arg2[%c0, %c0_0, %c0_1] : memref<1x4x256xf32, #tpu.memory_space<vmem>>, vector<1x4x256xf32>
    %c0_2 = arith.constant 0 : index
    %c0_3 = arith.constant 0 : index
    %c0_4 = arith.constant 0 : index
    %1 = vector.load %arg6[%c0_2, %c0_3, %c0_4] : memref<1x8x256xf32, #tpu.memory_space<vmem>>, vector<1x4x256xf32>
    tpu.vector_store %arg6[%c0_2, %c0_3, %c0_4], %0 {strides = array<i32>} : memref<1x8x256xf32, #tpu.memory_space<vmem>>, vector<1x4x256xf32>,
    %c0_5 = arith.constant 0 : index
    %c0_6 = arith.constant 0 : index
    %c0_7 = arith.constant 0 : index
    %2 = vector.load %arg3[%c0_5, %c0_6, %c0_7] : memref<1x4x256xf32, #tpu.memory_space<vmem>>, vector<1x4x256xf32>
    %c0_8 = arith.constant 0 : index
    %c0_9 = arith.constant 0 : index
    %c0_10 = arith.constant 0 : index
    %3 = vector.load %arg4[%c0_8, %c0_9, %c0_10] : memref<1x4x1xf32, #tpu.memory_space<vmem>>, vector<1x4x1xf32>
    %4 = vector.broadcast %3 : vector<1x4x1xf32> to vector<1x4x256xf32>
    %5 = arith.mulf %2, %4 : vector<1x4x256xf32>
    %c0_11 = arith.constant 0 : index
    %c0_12 = arith.constant 0 : index
    %c0_13 = arith.constant 0 : index
    %6 = vector.load %arg5[%c0_11, %c0_12, %c0_13] : memref<1x4x1xf32, #tpu.memory_space<vmem>>, vector<1x4x1xf32>
    %7 = vector.broadcast %6 : vector<1x4x1xf32> to vector<1x4x256xf32>
    %8 = arith.addf %5, %7 : vector<1x4x256xf32>
    %c0_14 = arith.constant 0 : index
    %c4 = arith.constant 4 : index
    %c0_15 = arith.constant 0 : index
    %9 = vector.load %arg6[%c0_14, %c4, %c0_15] : memref<1x8x256xf32, #tpu.memory_space<vmem>>, vector<1x4x256xf32>
    tpu.vector_store %arg6[%c0_14, %c4, %c0_15], %8 {strides = array<i32>} : memref<1x8x256xf32, #tpu.memory_space<vmem>>, vector<1x4x256xf32>,
    return
  }
  func.func @transform_0(%arg0: i32, %arg1: i32) -> (i32, i32, i32) {
    %c0_i32 = arith.constant 0 : i32
    %c0_i32_0 = arith.constant 0 : i32
    return %arg0, %c0_i32, %arg1 : i32, i32, i32
  }
  func.func @transform_1(%arg0: i32, %arg1: i32) -> (i32, i32, i32) {
    %c0_i32 = arith.constant 0 : i32
    %c0_i32_0 = arith.constant 0 : i32
    return %arg0, %c0_i32, %arg1 : i32, i32, i32
  }
  func.func @transform_2(%arg0: i32, %arg1: i32) -> (i32, i32, i32) {
    %c0_i32 = arith.constant 0 : i32
    %c0_i32_0 = arith.constant 0 : i32
    %c0_i32_1 = arith.constant 0 : i32
    %c0_i32_2 = arith.constant 0 : i32
    return %c0_i32, %c0_i32_0, %c0_i32_1 : i32, i32, i32
  }
  func.func @transform_3(%arg0: i32, %arg1: i32) -> (i32, i32, i32) {
    %c0_i32 = arith.constant 0 : i32
    %c0_i32_0 = arith.constant 0 : i32
    %c0_i32_1 = arith.constant 0 : i32
    %c0_i32_2 = arith.constant 0 : i32
    return %c0_i32, %c0_i32_0, %c0_i32_1 : i32, i32, i32
  }
  func.func @transform_4(%arg0: i32, %arg1: i32) -> (i32, i32, i32) {
    %c0_i32 = arith.constant 0 : i32
    %c0_i32_0 = arith.constant 0 : i32
    return %arg0, %c0_i32, %arg1 : i32, i32, i32
  }
}

</mosaic_0001>

<llo_original>
// kernel: unet_innermost_forward.2
$region0: #{unet_innermost_forward.2}
  #allocation0 [shape = 'u32[]', space=smem, size = 0x4, offset = 0x4, fixed_abs, tag = 'smem constant byte address 0x4 - core index']
  #allocation1 [shape = 'u32[72,128]{1,0:T(1,128)}', space=vmem, size = 0x9000, scoped, tag = 'internal scratch']
  #allocation2 [shape = 'bf16[128,128]{1,0:T(8,128)(2,1)}', space=vmem, size = 0x8000, scoped, tag = 'scratch operand']
  %s0 = inlined_call_operand.vmem [shape: bf16[128,64], index: 0, kind: input, shape index: {}]
  %s1 = inlined_call_operand.vmem [shape: bf16[64,128], index: 1, kind: input, shape index: {}]
  %s2 = inlined_call_operand.vmem [shape: bf16[128,128], index: 2, kind: input, shape index: {}]
  %s3 = inlined_call_operand.vmem [shape: bf16[128,128], index: 3, kind: output, shape index: {}]
  %s4 = sld [smem:[#allocation0]]
  $region26: #{unet_innermost_forward.2} parent=0
    _
  %s6 = ssub.s32 1, %s4
  %s7 = scalar_select 0, %s6, %s4
  // Predicated region
  $region2: #{unet_innermost_forward.2} parent=0 // pred_check
    _
  $region3: #{unet_innermost_forward.2} parent=0 // pred_check_branch
    %9 = sbr.rel (0) target = $region5
  $region4: #{unet_innermost_forward.2} parent=0 // pred_region
    _
  $region5: #{unet_innermost_forward.2} parent=0 // pred_fallthru
    _
  // Predicated region
  $region6: #{unet_innermost_forward.2} parent=0 // pred_check
    _
  $region7: #{unet_innermost_forward.2} parent=0 // pred_check_branch
    %11 = sbr.rel (0) target = $region9
  $region8: #{unet_innermost_forward.2} parent=0 // pred_region
    _
  $region9: #{unet_innermost_forward.2} parent=0 // pred_fallthru
    _
  // Predicated region
  $region10: #{unet_innermost_forward.2} parent=0 // pred_check
    _
  $region11: #{unet_innermost_forward.2} parent=0 // pred_check_branch
    %13 = sbr.rel (0) target = $region13
  $region12: #{unet_innermost_forward.2} parent=0 // pred_region
    _
  $region13: #{unet_innermost_forward.2} parent=0 // pred_fallthru
    _
  %p15 = scmp.eq.s32.totalorder 0, 0
  // Predicated region
  $region14: #{unet_innermost_forward.2} parent=0 // pred_check
    %p16 = pneg %p15
  $region15: #{unet_innermost_forward.2} parent=0 // pred_check_branch
    %18 = sbr.rel (%p16) target = $region17
  $region16: #{unet_innermost_forward.2} parent=0 // pred_region
    %v19 = vld [vmem:[%s0] sm:$0xf]
    %v20 = vld [vmem:[%s0 + $0x4] sm:$0xf]
    %v21 = vld [vmem:[%s0 + $0x8] sm:$0xf]
    %v22 = vld [vmem:[%s0 + $0xc] sm:$0xf]
    %v23 = vld [vmem:[%s0 + $0x10] sm:$0xf]
    %v24 = vld [vmem:[%s0 + $0x14] sm:$0xf]
    %v25 = vld [vmem:[%s0 + $0x18] sm:$0xf]
    %v26 = vld [vmem:[%s0 + $0x1c] sm:$0xf]
    %v27 = vld [vmem:[%s0 + $0x20] sm:$0xf]
    %v28 = vld [vmem:[%s0 + $0x24] sm:$0xf]
    %v29 = vld [vmem:[%s0 + $0x28] sm:$0xf]
    %v30 = vld [vmem:[%s0 + $0x2c] sm:$0xf]
    %v31 = vld [vmem:[%s0 + $0x30] sm:$0xf]
    %v32 = vld [vmem:[%s0 + $0x34] sm:$0xf]
    %v33 = vld [vmem:[%s0 + $0x38] sm:$0xf]
    %v34 = vld [vmem:[%s0 + $0x3c] sm:$0xf]
    %v35 = vld [vmem:[%s1] sm:$0xf]
    %v36 = vld [vmem:[%s1 + $0x4] sm:$0xf]
    %v37 = vld [vmem:[%s1 + $0x8] sm:$0xf]
    %v38 = vld [vmem:[%s1 + $0xc] sm:$0xf]
    %v39 = vld [vmem:[%s1 + $0x10] sm:$0xf]
    %v40 = vld [vmem:[%s1 + $0x14] sm:$0xf]
    %v41 = vld [vmem:[%s1 + $0x18] sm:$0xf]
    %v42 = vld [vmem:[%s1 + $0x1c] sm:$0xf]
    %v59 = vunpack.c.l.b16 %v19
    %v60 = vunpack.c.l.b16 %v20
    %v61 = vunpack.c.l.b16 %v21
    %v62 = vunpack.c.l.b16 %v22
    %v63 = vunpack.c.l.b16 %v23
    %v64 = vunpack.c.l.b16 %v24
    %v65 = vunpack.c.l.b16 %v25
    %v66 = vunpack.c.l.b16 %v26
    %v67 = vunpack.c.l.b16 %v27
    %v68 = vunpack.c.l.b16 %v28
    %v69 = vunpack.c.l.b16 %v29
    %v70 = vunpack.c.l.b16 %v30
    %v71 = vunpack.c.l.b16 %v31
    %v72 = vunpack.c.l.b16 %v32
    %v73 = vunpack.c.l.b16 %v33
    %v74 = vunpack.c.l.b16 %v34
    %v75 = vpack.c.b16 %v60, %v59
    %v76 = vpack.c.b16 %v62, %v61
    %v77 = vpack.c.b16 %v64, %v63
    %v78 = vpack.c.b16 %v66, %v65
    %v79 = vpack.c.b16 %v68, %v67
    %v80 = vpack.c.b16 %v70, %v69
    %v81 = vpack.c.b16 %v72, %v71
    %v82 = vpack.c.b16 %v74, %v73
    %v91 = vunpack.c.l.b16 %v35
    %v92 = vunpack.c.l.b16 %v36
    %v93 = vunpack.c.l.b16 %v37
    %v94 = vunpack.c.l.b16 %v38
    %v95 = vunpack.c.l.b16 %v39
    %v96 = vunpack.c.l.b16 %v40
    %v97 = vunpack.c.l.b16 %v41
    %v98 = vunpack.c.l.b16 %v42
    %v99 = vpack.c.b16 %v92, %v91
    %v100 = vpack.c.b16 %v94, %v93
    %v101 = vpack.c.b16 %v96, %v95
    %v102 = vpack.c.b16 %v98, %v97
    %vm107 = vcmask 523264
    %v109 = vsel %vm107, %v75, 0
    %v112 = vsel %vm107, %v76, 0
    %v115 = vsel %vm107, %v77, 0
    %v118 = vsel %vm107, %v78, 0
    %v121 = vsel %vm107, %v79, 0
    %v124 = vsel %vm107, %v80, 0
    %v127 = vsel %vm107, %v81, 0
    %v130 = vsel %vm107, %v82, 0
    %132 = vmatpush.bf16.msra.mxu0 0
    %133 = vmatpush.bf16.msra.mxu0 0
    %134 = vmatpush.bf16.msra.mxu0 0
    %135 = vmatpush.bf16.msra.mxu0 0
    %136 = vmatpush.bf16.msra.mxu0 %v102
    %137 = vmatpush.bf16.msra.mxu0 %v101
    %138 = vmatpush.bf16.msra.mxu0 %v100
    %139 = vmatpush.bf16.msra.mxu0 %v99
    %140 = vmatmul.bf16.gmra.mxu0 %v109
    %v141 = vpop.f32.mrf.mxu0
    %v142 = vadd.f32 0.0, %v141
    %v143 = vpop.f32.mrf.mxu0
    %v144 = vadd.f32 0.0, %v143
    %145 = vmatmul.bf16.gmra.mxu0 %v112
    %v146 = vpop.f32.mrf.mxu0
    %v147 = vadd.f32 0.0, %v146
    %v148 = vpop.f32.mrf.mxu0
    %v149 = vadd.f32 0.0, %v148
    %150 = vmatmul.bf16.gmra.mxu0 %v115
    %v151 = vpop.f32.mrf.mxu0
    %v152 = vadd.f32 0.0, %v151
    %v153 = vpop.f32.mrf.mxu0
    %v154 = vadd.f32 0.0, %v153
    %155 = vmatmul.bf16.gmra.mxu0 %v118
    %v156 = vpop.f32.mrf.mxu0
    %v157 = vadd.f32 0.0, %v156
    %v158 = vpop.f32.mrf.mxu0
    %v159 = vadd.f32 0.0, %v158
    %160 = vmatmul.bf16.gmra.mxu0 %v121
    %v161 = vpop.f32.mrf.mxu0
    %v162 = vadd.f32 0.0, %v161
    %v163 = vpop.f32.mrf.mxu0
    %v164 = vadd.f32 0.0, %v163
    %165 = vmatmul.bf16.gmra.mxu0 %v124
    %v166 = vpop.f32.mrf.mxu0
    %v167 = vadd.f32 0.0, %v166
    %v168 = vpop.f32.mrf.mxu0
    %v169 = vadd.f32 0.0, %v168
    %170 = vmatmul.bf16.gmra.mxu0 %v127
    %v171 = vpop.f32.mrf.mxu0
    %v172 = vadd.f32 0.0, %v171
    %v173 = vpop.f32.mrf.mxu0
    %v174 = vadd.f32 0.0, %v173
    %175 = vmatmul.bf16.gmra.mxu0 %v130
    %v176 = vpop.f32.mrf.mxu0
    %v177 = vadd.f32 0.0, %v176
    %v178 = vpop.f32.mrf.mxu0
    %v179 = vadd.f32 0.0, %v178
    %180 = vdwg.mxu0
    %v181 = vmax.f32 %v142, 0.0
    %v182 = vmax.f32 %v144, 0.0
    %v183 = vmax.f32 %v147, 0.0
    %v184 = vmax.f32 %v149, 0.0
    %v185 = vmax.f32 %v152, 0.0
    %v186 = vmax.f32 %v154, 0.0
    %v187 = vmax.f32 %v157, 0.0
    %v188 = vmax.f32 %v159, 0.0
    %v189 = vmax.f32 %v162, 0.0
    %v190 = vmax.f32 %v164, 0.0
    %v191 = vmax.f32 %v167, 0.0
    %v192 = vmax.f32 %v169, 0.0
    %v193 = vmax.f32 %v172, 0.0
    %v194 = vmax.f32 %v174, 0.0
    %v195 = vmax.f32 %v177, 0.0
    %v196 = vmax.f32 %v179, 0.0
    %v197 = vpack.c.bf16 %v181, %v181
    %v198 = vpack.c.bf16 %v182, %v182
    %v199 = vpack.c.bf16 %v183, %v183
    %v200 = vpack.c.bf16 %v184, %v184
    %v201 = vpack.c.bf16 %v185, %v185
    %v202 = vpack.c.bf16 %v186, %v186
    %v203 = vpack.c.bf16 %v187, %v187
    %v204 = vpack.c.bf16 %v188, %v188
    %v205 = vpack.c.bf16 %v189, %v189
    %v206 = vpack.c.bf16 %v190, %v190
    %v207 = vpack.c.bf16 %v191, %v191
    %v208 = vpack.c.bf16 %v192, %v192
    %v209 = vpack.c.bf16 %v193, %v193
    %v210 = vpack.c.bf16 %v194, %v194
    %v211 = vpack.c.bf16 %v195, %v195
    %v212 = vpack.c.bf16 %v196, %v196
    %213 = vst [vmem:[#allocation2] sm:$0xf] %v197
    %214 = vst [vmem:[#allocation2 + $0x4] sm:$0xf] %v198
    %215 = vst [vmem:[#allocation2 + $0x8] sm:$0xf] %v199
    %216 = vst [vmem:[#allocation2 + $0xc] sm:$0xf] %v200
    %217 = vst [vmem:[#allocation2 + $0x10] sm:$0xf] %v201
    %218 = vst [vmem:[#allocation2 + $0x14] sm:$0xf] %v202
    %219 = vst [vmem:[#allocation2 + $0x18] sm:$0xf] %v203
    %220 = vst [vmem:[#allocation2 + $0x1c] sm:$0xf] %v204
    %221 = vst [vmem:[#allocation2 + $0x20] sm:$0xf] %v205
    %222 = vst [vmem:[#allocation2 + $0x24] sm:$0xf] %v206
    %223 = vst [vmem:[#allocation2 + $0x28] sm:$0xf] %v207
    %224 = vst [vmem:[#allocation2 + $0x2c] sm:$0xf] %v208
    %225 = vst [vmem:[#allocation2 + $0x30] sm:$0xf] %v209
    %226 = vst [vmem:[#allocation2 + $0x34] sm:$0xf] %v210
    %227 = vst [vmem:[#allocation2 + $0x38] sm:$0xf] %v211
    %228 = vst [vmem:[#allocation2 + $0x3c] sm:$0xf] %v212
  $region17: #{unet_innermost_forward.2} parent=0 // pred_fallthru
    _
  %v229 = vld [vmem:[#allocation2] sm:$0xf]
  %v230 = vld [vmem:[#allocation2 + $0x4] sm:$0xf]
  %v231 = vld [vmem:[#allocation2 + $0x8] sm:$0xf]
  %v232 = vld [vmem:[#allocation2 + $0xc] sm:$0xf]
  %v233 = vld [vmem:[#allocation2 + $0x10] sm:$0xf]
  %v234 = vld [vmem:[#allocation2 + $0x14] sm:$0xf]
  %v235 = vld [vmem:[#allocation2 + $0x18] sm:$0xf]
  %v236 = vld [vmem:[#allocation2 + $0x1c] sm:$0xf]
  %v237 = vld [vmem:[#allocation2 + $0x20] sm:$0xf]
  %v238 = vld [vmem:[#allocation2 + $0x24] sm:$0xf]
  %v239 = vld [vmem:[#allocation2 + $0x28] sm:$0xf]
  %v240 = vld [vmem:[#allocation2 + $0x2c] sm:$0xf]
  %v241 = vld [vmem:[#allocation2 + $0x30] sm:$0xf]
  %v242 = vld [vmem:[#allocation2 + $0x34] sm:$0xf]
  %v243 = vld [vmem:[#allocation2 + $0x38] sm:$0xf]
  %v244 = vld [vmem:[#allocation2 + $0x3c] sm:$0xf]
  %v245 = vld [vmem:[%s2] sm:$0xf]
  %v246 = vld [vmem:[%s2 + $0x4] sm:$0xf]
  %v247 = vld [vmem:[%s2 + $0x8] sm:$0xf]
  %v248 = vld [vmem:[%s2 + $0xc] sm:$0xf]
  %v249 = vld [vmem:[%s2 + $0x10] sm:$0xf]
  %v250 = vld [vmem:[%s2 + $0x14] sm:$0xf]
  %v251 = vld [vmem:[%s2 + $0x18] sm:$0xf]
  %v252 = vld [vmem:[%s2 + $0x1c] sm:$0xf]
  %v253 = vld [vmem:[%s2 + $0x20] sm:$0xf]
  %v254 = vld [vmem:[%s2 + $0x24] sm:$0xf]
  %v255 = vld [vmem:[%s2 + $0x28] sm:$0xf]
  %v256 = vld [vmem:[%s2 + $0x2c] sm:$0xf]
  %v257 = vld [vmem:[%s2 + $0x30] sm:$0xf]
  %v258 = vld [vmem:[%s2 + $0x34] sm:$0xf]
  %v259 = vld [vmem:[%s2 + $0x38] sm:$0xf]
  %v260 = vld [vmem:[%s2 + $0x3c] sm:$0xf]
  %v277 = vunpack.c.l.b16 %v229
  %v278 = vunpack.c.l.b16 %v230
  %v279 = vunpack.c.l.b16 %v231
  %v280 = vunpack.c.l.b16 %v232
  %v281 = vunpack.c.l.b16 %v233
  %v282 = vunpack.c.l.b16 %v234
  %v283 = vunpack.c.l.b16 %v235
  %v284 = vunpack.c.l.b16 %v236
  %v285 = vunpack.c.l.b16 %v237
  %v286 = vunpack.c.l.b16 %v238
  %v287 = vunpack.c.l.b16 %v239
  %v288 = vunpack.c.l.b16 %v240
  %v289 = vunpack.c.l.b16 %v241
  %v290 = vunpack.c.l.b16 %v242
  %v291 = vunpack.c.l.b16 %v243
  %v292 = vunpack.c.l.b16 %v244
  %v293 = vpack.c.b16 %v278, %v277
  %v294 = vpack.c.b16 %v280, %v279
  %v295 = vpack.c.b16 %v282, %v281
  %v296 = vpack.c.b16 %v284, %v283
  %v297 = vpack.c.b16 %v286, %v285
  %v298 = vpack.c.b16 %v288, %v287
  %v299 = vpack.c.b16 %v290, %v289
  %v300 = vpack.c.b16 %v292, %v291
  %v325 = vunpack.c.l.b16 %v245
  %v326 = vunpack.c.l.b16 %v246
  %v327 = vunpack.c.l.b16 %v247
  %v328 = vunpack.c.l.b16 %v248
  %v329 = vunpack.c.l.b16 %v249
  %v330 = vunpack.c.l.b16 %v250
  %v331 = vunpack.c.l.b16 %v251
  %v332 = vunpack.c.l.b16 %v252
  %v333 = vunpack.c.l.b16 %v253
  %v334 = vunpack.c.l.b16 %v254
  %v335 = vunpack.c.l.b16 %v255
  %v336 = vunpack.c.l.b16 %v256
  %v337 = vunpack.c.l.b16 %v257
  %v338 = vunpack.c.l.b16 %v258
  %v339 = vunpack.c.l.b16 %v259
  %v340 = vunpack.c.l.b16 %v260
  %v341 = vpack.c.b16 %v326, %v325
  %v342 = vpack.c.b16 %v328, %v327
  %v343 = vpack.c.b16 %v330, %v329
  %v344 = vpack.c.b16 %v332, %v331
  %v345 = vpack.c.b16 %v334, %v333
  %v346 = vpack.c.b16 %v336, %v335
  %v347 = vpack.c.b16 %v338, %v337
  %v348 = vpack.c.b16 %v340, %v339
  %357 = vmatpush.bf16.msra.mxu0 %v348
  %358 = vmatpush.bf16.msra.mxu0 %v347
  %359 = vmatpush.bf16.msra.mxu0 %v346
  %360 = vmatpush.bf16.msra.mxu0 %v345
  %361 = vmatpush.bf16.msra.mxu0 %v344
  %362 = vmatpush.bf16.msra.mxu0 %v343
  %363 = vmatpush.bf16.msra.mxu0 %v342
  %364 = vmatpush.bf16.msra.mxu0 %v341
  %365 = vmatmul.bf16.gmra.mxu0 %v293
  %v366 = vpop.f32.mrf.mxu0
  %v367 = vadd.f32 0.0, %v366
  %v368 = vpop.f32.mrf.mxu0
  %v369 = vadd.f32 0.0, %v368
  %370 = vmatmul.bf16.gmra.mxu0 %v294
  %v371 = vpop.f32.mrf.mxu0
  %v372 = vadd.f32 0.0, %v371
  %v373 = vpop.f32.mrf.mxu0
  %v374 = vadd.f32 0.0, %v373
  %375 = vmatmul.bf16.gmra.mxu0 %v295
  %v376 = vpop.f32.mrf.mxu0
  %v377 = vadd.f32 0.0, %v376
  %v378 = vpop.f32.mrf.mxu0
  %v379 = vadd.f32 0.0, %v378
  %380 = vmatmul.bf16.gmra.mxu0 %v296
  %v381 = vpop.f32.mrf.mxu0
  %v382 = vadd.f32 0.0, %v381
  %v383 = vpop.f32.mrf.mxu0
  %v384 = vadd.f32 0.0, %v383
  %385 = vmatmul.bf16.gmra.mxu0 %v297
  %v386 = vpop.f32.mrf.mxu0
  %v387 = vadd.f32 0.0, %v386
  %v388 = vpop.f32.mrf.mxu0
  %v389 = vadd.f32 0.0, %v388
  %390 = vmatmul.bf16.gmra.mxu0 %v298
  %v391 = vpop.f32.mrf.mxu0
  %v392 = vadd.f32 0.0, %v391
  %v393 = vpop.f32.mrf.mxu0
  %v394 = vadd.f32 0.0, %v393
  %395 = vmatmul.bf16.gmra.mxu0 %v299
  %v396 = vpop.f32.mrf.mxu0
  %v397 = vadd.f32 0.0, %v396
  %v398 = vpop.f32.mrf.mxu0
  %v399 = vadd.f32 0.0, %v398
  %400 = vmatmul.bf16.gmra.mxu0 %v300
  %v401 = vpop.f32.mrf.mxu0
  %v402 = vadd.f32 0.0, %v401
  %v403 = vpop.f32.mrf.mxu0
  %v404 = vadd.f32 0.0, %v403
  %405 = vdwg.mxu0
  %v406 = vpack.c.bf16 %v367, %v367
  %v407 = vpack.c.bf16 %v369, %v369
  %v408 = vpack.c.bf16 %v372, %v372
  %v409 = vpack.c.bf16 %v374, %v374
  %v410 = vpack.c.bf16 %v377, %v377
  %v411 = vpack.c.bf16 %v379, %v379
  %v412 = vpack.c.bf16 %v382, %v382
  %v413 = vpack.c.bf16 %v384, %v384
  %v414 = vpack.c.bf16 %v387, %v387
  %v415 = vpack.c.bf16 %v389, %v389
  %v416 = vpack.c.bf16 %v392, %v392
  %v417 = vpack.c.bf16 %v394, %v394
  %v418 = vpack.c.bf16 %v397, %v397
  %v419 = vpack.c.bf16 %v399, %v399
  %v420 = vpack.c.bf16 %v402, %v402
  %v421 = vpack.c.bf16 %v404, %v404
  %422 = vst [vmem:[%s3] sm:$0xf] %v406
  %423 = vst [vmem:[%s3 + $0x4] sm:$0xf] %v407
  %424 = vst [vmem:[%s3 + $0x8] sm:$0xf] %v408
  %425 = vst [vmem:[%s3 + $0xc] sm:$0xf] %v409
  %426 = vst [vmem:[%s3 + $0x10] sm:$0xf] %v410
  %427 = vst [vmem:[%s3 + $0x14] sm:$0xf] %v411
  %428 = vst [vmem:[%s3 + $0x18] sm:$0xf] %v412
  %429 = vst [vmem:[%s3 + $0x1c] sm:$0xf] %v413
  %430 = vst [vmem:[%s3 + $0x20] sm:$0xf] %v414
  %431 = vst [vmem:[%s3 + $0x24] sm:$0xf] %v415
  %432 = vst [vmem:[%s3 + $0x28] sm:$0xf] %v416
  %433 = vst [vmem:[%s3 + $0x2c] sm:$0xf] %v417
  %434 = vst [vmem:[%s3 + $0x30] sm:$0xf] %v418
  %435 = vst [vmem:[%s3 + $0x34] sm:$0xf] %v419
  %436 = vst [vmem:[%s3 + $0x38] sm:$0xf] %v420
  %437 = vst [vmem:[%s3 + $0x3c] sm:$0xf] %v421
  // Predicated region
  $region18: #{unet_innermost_forward.2} parent=0 // pred_check
    _
  $region19: #{unet_innermost_forward.2} parent=0 // pred_check_branch
    %439 = sbr.rel (0) target = $region21
  $region20: #{unet_innermost_forward.2} parent=0 // pred_region
    _
  $region21: #{unet_innermost_forward.2} parent=0 // pred_fallthru
    _
  // Predicated region
  $region22: #{unet_innermost_forward.2} parent=0 // pred_check
    _
  $region23: #{unet_innermost_forward.2} parent=0 // pred_check_branch
    %441 = sbr.rel (0) target = $region25
  $region24: #{unet_innermost_forward.2} parent=0 // pred_region
    _
  $region25: #{unet_innermost_forward.2} parent=0 // pred_fallthru
    _

// kernel: unet_innermost_forward.3
$region0: #{unet_innermost_forward.3}
  #allocation0 [shape = 'u32[]', space=smem, size = 0x4, offset = 0x4, fixed_abs, tag = 'smem constant byte address 0x4 - core index']
  #allocation1 [shape = 'u32[72,128]{1,0:T(1,128)}', space=vmem, size = 0x9000, scoped, tag = 'internal scratch']
  %s0 = inlined_call_operand.vmem [shape: f32[2,4,256], index: 0, kind: input, shape index: {}]
  %s1 = inlined_call_operand.vmem [shape: f32[2,4,256], index: 1, kind: input, shape index: {}]
  %s2 = inlined_call_operand.vmem [shape: f32[1,4,1], index: 2, kind: input, shape index: {}]
  %s3 = inlined_call_operand.vmem [shape: f32[1,4,1], index: 3, kind: input, shape index: {}]
  %s4 = inlined_call_operand.vmem [shape: f32[2,8,256], index: 4, kind: output, shape index: {}]
  %s5 = sld [smem:[#allocation0]]
  $region49: #{unet_innermost_forward.3} parent=0
    _
  %s7 = ssub.s32 1, %s5
  %s8 = scalar_select 0, %s7, %s5
  loop: start=0, step=1, limit=4
  $region2: #{unet_innermost_forward.3} parent=0 // loop_pre_header
    _
  $region3: #{unet_innermost_forward.3} parent=0 // loop_header
    %s10 = sphi 0, %s14
    %p11 = scmp.ge.s32.totalorder %s10, 4
    %s17 = sphi 0, %s29
    %s18 = sphi 0, %s25
    %s19 = sphi 0, %s17
    %s20 = sphi 0, %s18
    %s21 = sphi 0, %s19
    %s22 = sphi 0, %s20
    %s34 = sphi 0, %s36
    %s37 = sphi 0, %s34
    %s38 = sphi 0, %s37
    %s54 = sphi 0, %s38
    %s62 = sphi 0, %s64
    %s65 = sphi 0, %s62
    %s66 = sphi 0, %s65
    %s82 = sphi 0, %s66
    %s86 = sphi 0, %s86
    %s88 = sphi 0, %s86
    %s89 = sphi 0, %s88
    %s103 = sphi 0, %s89
    %s107 = sphi 0, %s107
    %s109 = sphi 0, %s107
    %s110 = sphi 0, %s109
    %s124 = sphi 0, %s110
    %s132 = sphi 0, %s134
    %s135 = sphi 0, %s132
    %s136 = sphi 0, %s135
    %s152 = sphi 0, %s136
  $region4: #{unet_innermost_forward.3} parent=0 // loop_header_branch
    %13 = sbr.rel (%p11) target = $region8
  $region5: #{unet_innermost_forward.3} parent=0 // loop_body
    %s15 = ssub.s32 %s10, 1
    %s16 = ssub.s32 %s10, 2
    %s23 = sadd.s32 1, %s18
    %p24 = scmp.ge.s32.totalorder %s23, 1
    %s25 = scalar_select %p24, 0, %s23
    %s26 = sadd.s32 1, %s17
    %s27 = scalar_select %p24, %s26, %s17
    %p28 = scmp.ge.s32.totalorder %s27, 2
    %s29 = scalar_select %p28, 0, %s27
    %s30 = ssub.s32 %s17, %s29
    %s31 = ssub.s32 %s18, %s25
    %s32 = sor.u32 %s30, %s31
    %p33 = scmp.eq.s32.totalorder %s32, 0
    %s35 = sadd.s32 %s34, 1
    %s36 = scalar_select %p33, %s34, %s35
    %p39 = pneg %p33
    %p40 = scmp.eq.s32.totalorder %s10, 1
    %p41 = por %p39, %p40
    %p42 = scmp.ne.s32.totalorder %s34, %s37
    %p43 = scmp.eq.s32.totalorder %s10, 0
    %p44 = por %p42, %p43
    %p45 = scmp.ne.s32.totalorder %s34, %s37
    %p46 = scmp.eq.s32.totalorder %s15, 1
    %p47 = por %p45, %p46
    %p48 = scmp.ne.s32.totalorder %s37, %s38
    %p49 = scmp.eq.s32.totalorder %s15, 0
    %p50 = por %p48, %p49
    %p51 = scmp.ne.s32.totalorder %s37, %s38
    %p52 = scmp.eq.s32.totalorder %s16, 1
    %p53 = por %p51, %p52
    %p55 = scmp.ne.s32.totalorder %s38, %s54
    %p56 = scmp.eq.s32.totalorder %s16, 0
    %p57 = por %p55, %p56
    %s58 = ssub.s32 %s17, %s29
    %s59 = ssub.s32 %s18, %s25
    %s60 = sor.u32 %s58, %s59
    %p61 = scmp.eq.s32.totalorder %s60, 0
    %s63 = sadd.s32 %s62, 1
    %s64 = scalar_select %p61, %s62, %s63
    %p67 = pneg %p61
    %p68 = scmp.eq.s32.totalorder %s10, 1
    %p69 = por %p67, %p68
    %p70 = scmp.ne.s32.totalorder %s62, %s65
    %p71 = scmp.eq.s32.totalorder %s10, 0
    %p72 = por %p70, %p71
    %p73 = scmp.ne.s32.totalorder %s62, %s65
    %p74 = scmp.eq.s32.totalorder %s15, 1
    %p75 = por %p73, %p74
    %p76 = scmp.ne.s32.totalorder %s65, %s66
    %p77 = scmp.eq.s32.totalorder %s15, 0
    %p78 = por %p76, %p77
    %p79 = scmp.ne.s32.totalorder %s65, %s66
    %p80 = scmp.eq.s32.totalorder %s16, 1
    %p81 = por %p79, %p80
    %p83 = scmp.ne.s32.totalorder %s66, %s82
    %p84 = scmp.eq.s32.totalorder %s16, 0
    %p85 = por %p83, %p84
    %s87 = sadd.s32 %s86, 1
    %p90 = scmp.eq.s32.totalorder %s10, 1
    %p91 = scmp.ne.s32.totalorder %s86, %s88
    %p92 = scmp.eq.s32.totalorder %s10, 0
    %p93 = por %p91, %p92
    %p94 = scmp.ne.s32.totalorder %s86, %s88
    %p95 = scmp.eq.s32.totalorder %s15, 1
    %p96 = por %p94, %p95
    %p97 = scmp.ne.s32.totalorder %s88, %s89
    %p98 = scmp.eq.s32.totalorder %s15, 0
    %p99 = por %p97, %p98
    %p100 = scmp.ne.s32.totalorder %s88, %s89
    %p101 = scmp.eq.s32.totalorder %s16, 1
    %p102 = por %p100, %p101
    %p104 = scmp.ne.s32.totalorder %s89, %s103
    %p105 = scmp.eq.s32.totalorder %s16, 0
    %p106 = por %p104, %p105
    %s108 = sadd.s32 %s107, 1
    %p111 = scmp.eq.s32.totalorder %s10, 1
    %p112 = scmp.ne.s32.totalorder %s107, %s109
    %p113 = scmp.eq.s32.totalorder %s10, 0
    %p114 = por %p112, %p113
    %p115 = scmp.ne.s32.totalorder %s107, %s109
    %p116 = scmp.eq.s32.totalorder %s15, 1
    %p117 = por %p115, %p116
    %p118 = scmp.ne.s32.totalorder %s109, %s110
    %p119 = scmp.eq.s32.totalorder %s15, 0
    %p120 = por %p118, %p119
    %p121 = scmp.ne.s32.totalorder %s109, %s110
    %p122 = scmp.eq.s32.totalorder %s16, 1
    %p123 = por %p121, %p122
    %p125 = scmp.ne.s32.totalorder %s110, %s124
    %p126 = scmp.eq.s32.totalorder %s16, 0
    %p127 = por %p125, %p126
    %s128 = ssub.s32 %s17, %s29
    %s129 = ssub.s32 %s18, %s25
    %s130 = sor.u32 %s128, %s129
    %p131 = scmp.eq.s32.totalorder %s130, 0
    %s133 = sadd.s32 %s132, 1
    %s134 = scalar_select %p131, %s132, %s133
    %p137 = pneg %p131
    %p138 = scmp.eq.s32.totalorder %s10, 1
    %p139 = por %p137, %p138
    %p140 = scmp.ne.s32.totalorder %s132, %s135
    %p141 = scmp.eq.s32.totalorder %s10, 0
    %p142 = por %p140, %p141
    %p143 = scmp.ne.s32.totalorder %s132, %s135
    %p144 = scmp.eq.s32.totalorder %s15, 1
    %p145 = por %p143, %p144
    %p146 = scmp.ne.s32.totalorder %s135, %s136
    %p147 = scmp.eq.s32.totalorder %s15, 0
    %p148 = por %p146, %p147
    %p149 = scmp.ne.s32.totalorder %s135, %s136
    %p150 = scmp.eq.s32.totalorder %s16, 1
    %p151 = por %p149, %p150
    %p153 = scmp.ne.s32.totalorder %s136, %s152
    %p154 = scmp.eq.s32.totalorder %s16, 0
    %p155 = por %p153, %p154
    %p156 = scmp.le.s32.totalorder 1, %s10
    %p157 = scmp.lt.s32.totalorder %s10, 3
    %p158 = pnand %p156, %p157
    %p159 = pneg %p158
    // Predicated region
    $region9: #{unet_innermost_forward.3} parent=5 // pred_check
      _
    $region10: #{unet_innermost_forward.3} parent=5 // pred_check_branch
      %161 = sbr.rel (%p158) target = $region12
    $region11: #{unet_innermost_forward.3} parent=5 // pred_region
      %s162 = ssub.s32 %s10, 1
      // Predicated region
      $region13: #{unet_innermost_forward.3} parent=11 // pred_check
        %p163 = pneg %p99
      $region14: #{unet_innermost_forward.3} parent=11 // pred_check_branch
        %165 = sbr.rel (%p163) target = $region16
      $region15: #{unet_innermost_forward.3} parent=11 // pred_region
        _
      $region16: #{unet_innermost_forward.3} parent=11 // pred_fallthru
        _
      // Predicated region
      $region17: #{unet_innermost_forward.3} parent=11 // pred_check
        %p166 = pneg %p120
      $region18: #{unet_innermost_forward.3} parent=11 // pred_check_branch
        %168 = sbr.rel (%p166) target = $region20
      $region19: #{unet_innermost_forward.3} parent=11 // pred_region
        _
      $region20: #{unet_innermost_forward.3} parent=11 // pred_fallthru
        _
    $region12: #{unet_innermost_forward.3} parent=5 // pred_fallthru
      _
    %p169 = scmp.lt.s32.totalorder %s10, 2
    // Predicated region
    $region21: #{unet_innermost_forward.3} parent=5 // pred_check
      %p170 = pneg %p169
    $region22: #{unet_innermost_forward.3} parent=5 // pred_check_branch
      %172 = sbr.rel (%p170) target = $region24
    $region23: #{unet_innermost_forward.3} parent=5 // pred_region
      // Predicated region
      $region25: #{unet_innermost_forward.3} parent=23 // pred_check
        %p173 = pneg %p44
      $region26: #{unet_innermost_forward.3} parent=23 // pred_check_branch
        %175 = sbr.rel (%p173) target = $region28
      $region27: #{unet_innermost_forward.3} parent=23 // pred_region
        %s176 = smul.u32 2, %s18
        %p177 = scmp.lt.s32.totalorder %s17, 1
        %s178 = scalar_select %p177, %s17, 1
        %p179 = scmp.lt.s32.totalorder %s176, 1
        %s180 = scalar_select %p179, %s176, 1
        %s181 = smul.addr %s178, 2
        %s182 = sadd.s32 %s180, %s181
        %s183 = smul.addr %s182, 4
        %s184 = scalar_lea.vmem %s0, %s183
        %s185 = smul.u32 2, %s18
      $region28: #{unet_innermost_forward.3} parent=23 // pred_fallthru
        _
      // Predicated region
      $region29: #{unet_innermost_forward.3} parent=23 // pred_check
        %p186 = pneg %p72
      $region30: #{unet_innermost_forward.3} parent=23 // pred_check_branch
        %188 = sbr.rel (%p186) target = $region32
      $region31: #{unet_innermost_forward.3} parent=23 // pred_region
        %s189 = smul.u32 2, %s18
        %p190 = scmp.lt.s32.totalorder %s17, 1
        %s191 = scalar_select %p190, %s17, 1
        %p192 = scmp.lt.s32.totalorder %s189, 1
        %s193 = scalar_select %p192, %s189, 1
        %s194 = smul.addr %s191, 2
        %s195 = sadd.s32 %s193, %s194
        %s196 = smul.addr %s195, 4
        %s197 = scalar_lea.vmem %s1, %s196
        %s198 = smul.u32 2, %s18
      $region32: #{unet_innermost_forward.3} parent=23 // pred_fallthru
        _
    $region24: #{unet_innermost_forward.3} parent=5 // pred_fallthru
      _
    %p199 = scmp.le.s32.totalorder 1, %s10
    %p200 = scmp.lt.s32.totalorder %s10, 3
    %p201 = pnand %p199, %p200
    %p202 = pneg %p201
    // Predicated region
    $region33: #{unet_innermost_forward.3} parent=5 // pred_check
      _
    $region34: #{unet_innermost_forward.3} parent=5 // pred_check_branch
      %204 = sbr.rel (%p201) target = $region36
    $region35: #{unet_innermost_forward.3} parent=5 // pred_region
      %s205 = ssub.s32 %s10, 1
      %s206 = smul.u32 2, %s20
      %p207 = scmp.lt.s32.totalorder %s19, 1
      %s208 = scalar_select %p207, %s19, 1
      %p209 = scmp.lt.s32.totalorder %s206, 1
      %s210 = scalar_select %p209, %s206, 1
      %s211 = smul.addr %s208, 2
      %s212 = sadd.s32 %s210, %s211
      %s213 = smul.addr %s212, 4
      %s214 = scalar_lea.vmem %s0, %s213
      %p215 = pneg %p50
      %p216 = pneg %p47
      %s217 = smul.u32 2, %s20
      %p218 = scmp.lt.s32.totalorder %s19, 1
      %s219 = scalar_select %p218, %s19, 1
      %p220 = scmp.lt.s32.totalorder %s217, 1
      %s221 = scalar_select %p220, %s217, 1
      %s222 = smul.addr %s219, 2
      %s223 = sadd.s32 %s221, %s222
      %s224 = smul.addr %s223, 4
      %s225 = scalar_lea.vmem %s1, %s224
      %p226 = pneg %p78
      %p227 = pneg %p75
      %p228 = pneg %p99
      %p229 = pneg %p96
      %p230 = pneg %p120
      %p231 = pneg %p117
      %p232 = pneg %p148
      %p233 = pneg %p145
      %s234 = smul.u32 2, %s20
      %p235 = scmp.lt.s32.totalorder %s19, 1
      %s236 = scalar_select %p235, %s19, 1
      %p237 = scmp.lt.s32.totalorder %s234, 1
      %s238 = scalar_select %p237, %s234, 1
      %s239 = smul.addr %s236, 2
      %s240 = sadd.s32 %s238, %s239
      %s241 = smul.addr %s240, 8
      %s242 = scalar_lea.vmem %s4, %s241
      %s243 = smul.u32 2, %s20
      %p244 = scmp.lt.s32.totalorder %s19, 1
      %s245 = scalar_select %p244, %s19, 1
      %p246 = scmp.lt.s32.totalorder %s243, 1
      %s247 = scalar_select %p246, %s243, 1
      %s248 = smul.addr %s245, 2
      %s249 = sadd.s32 %s247, %s248
      %s250 = smul.addr %s249, 4
      %s251 = scalar_lea.vmem %s0, %s250
      %s252 = smul.u32 2, %s20
      %s253 = smul.u32 2, %s20
      %p254 = scmp.lt.s32.totalorder %s19, 1
      %s255 = scalar_select %p254, %s19, 1
      %p256 = scmp.lt.s32.totalorder %s253, 1
      %s257 = scalar_select %p256, %s253, 1
      %s258 = smul.addr %s255, 2
      %s259 = sadd.s32 %s257, %s258
      %s260 = smul.addr %s259, 4
      %s261 = scalar_lea.vmem %s1, %s260
      %s262 = smul.u32 2, %s20
      %s263 = smul.u32 2, %s20
      %p264 = scmp.lt.s32.totalorder %s19, 1
      %s265 = scalar_select %p264, %s19, 1
      %p266 = scmp.lt.s32.totalorder %s263, 1
      %s267 = scalar_select %p266, %s263, 1
      %s268 = smul.addr %s265, 2
      %s269 = sadd.s32 %s267, %s268
      %s270 = smul.addr %s269, 8
      %s271 = scalar_lea.vmem %s4, %s270
      %s272 = smul.u32 2, %s20
      %v273 = vld [vmem:[%s251] sm:$0xff]
      %275 = vst [vmem:[#allocation1] ss:$2 sm:$0xff] %v273
      %v276 = vld.sshfl [vmem:[#allocation1] sm:$0xff pattern:$0x75316420]
      %v277 = vld.sshfl [vmem:[#allocation1 + $0x8] sm:$0xff pattern:$0x75316420]
      %280 = vst [vmem:[%s271] sm:$0xf] %v276
      %281 = vst [vmem:[%s271 + $0x8] sm:$0xf] %v277
      %v282 = vld [vmem:[%s261] sm:$0xff]
      %v283 = vld [vmem:[%s2] sm:$0xf]
      %285 = vset.pattern.permute.xlu0 0
      %286 = vperm.xlu0 %285, %v283
      %v287 = vpop.permute.xlu0 %286
      %v289 = vunpack.c.l.s4 839922192
      %v290 = vunpack.c.0.s8 %v289
      %v291 = vperm.slane %v287, %v290
      %v293 = vmul.f32 %v282, %v291
      %v294 = vld [vmem:[%s3] sm:$0xf]
      %296 = vset.pattern.permute.xlu0 0
      %297 = vperm.xlu0 %296, %v294
      %v298 = vpop.permute.xlu0 %297
      %v300 = vunpack.c.l.s4 839922192
      %v301 = vunpack.c.0.s8 %v300
      %v302 = vperm.slane %v298, %v301
      %v304 = vadd.f32 %v293, %v302
      %s306 = scalar_lea.vmem [#allocation1], 1
      %307 = vst [vmem:[%s306] ss:$2 sm:$0xff] %v304
      %v308 = vld.sshfl [vmem:[#allocation1] sm:$0xff pattern:$0x75316420]
      %v309 = vld.sshfl [vmem:[#allocation1 + $0x8] sm:$0xff pattern:$0x75316420]
      %312 = vst [vmem:[%s271] sm:$0xf0] %v308
      %313 = vst [vmem:[%s271 + $0x8] sm:$0xf0] %v309
      %s314 = smul.u32 2, %s20
      %p315 = scmp.lt.s32.totalorder %s19, 1
      %s316 = scalar_select %p315, %s19, 1
      %p317 = scmp.lt.s32.totalorder %s314, 1
      %s318 = scalar_select %p317, %s314, 1
      %s319 = smul.addr %s316, 2
      %s320 = sadd.s32 %s318, %s319
      %s321 = smul.addr %s320, 8
      %s322 = scalar_lea.vmem %s4, %s321
      // Predicated region
      $region37: #{unet_innermost_forward.3} parent=35 // pred_check
        %p323 = pneg %p145
      $region38: #{unet_innermost_forward.3} parent=35 // pred_check_branch
        %325 = sbr.rel (%p323) target = $region40
      $region39: #{unet_innermost_forward.3} parent=35 // pred_region
        %s326 = smul.u32 2, %s20
      $region40: #{unet_innermost_forward.3} parent=35 // pred_fallthru
        _
    $region36: #{unet_innermost_forward.3} parent=5 // pred_fallthru
      _
    %p327 = scmp.le.s32.totalorder 2, %s10
    // Predicated region
    $region41: #{unet_innermost_forward.3} parent=5 // pred_check
      %p328 = pneg %p327
    $region42: #{unet_innermost_forward.3} parent=5 // pred_check_branch
      %330 = sbr.rel (%p328) target = $region44
    $region43: #{unet_innermost_forward.3} parent=5 // pred_region
      %s331 = ssub.s32 %s10, 2
      // Predicated region
      $region45: #{unet_innermost_forward.3} parent=43 // pred_check
        %p332 = pneg %p151
      $region46: #{unet_innermost_forward.3} parent=43 // pred_check_branch
        %334 = sbr.rel (%p332) target = $region48
      $region47: #{unet_innermost_forward.3} parent=43 // pred_region
        %s335 = smul.u32 2, %s22
        %p336 = scmp.lt.s32.totalorder %s21, 1
        %s337 = scalar_select %p336, %s21, 1
        %p338 = scmp.lt.s32.totalorder %s335, 1
        %s339 = scalar_select %p338, %s335, 1
        %s340 = smul.addr %s337, 2
        %s341 = sadd.s32 %s339, %s340
        %s342 = smul.addr %s341, 8
        %s343 = scalar_lea.vmem %s4, %s342
      $region48: #{unet_innermost_forward.3} parent=43 // pred_fallthru
        _
    $region44: #{unet_innermost_forward.3} parent=5 // pred_fallthru
      _
  $region6: #{unet_innermost_forward.3} parent=0 // loop_footer
    %s14 = sadd.s32 1, %s10
  $region7: #{unet_innermost_forward.3} parent=0 // loop_footer_branch
    %9 = sbr.rel target = $region3
  $region8: #{unet_innermost_forward.3} parent=0 // loop_exit
    _

</llo_original>
